<compile_context>
chip_gen: v7x
topology: tpu7x:2x2x1
jax: 0.10.0
libtpu: 0.0.40
codegen_flags: <defaults>
</compile_context>

<pallas_src>
import functools

import jax
import jax.numpy as jnp
from jax.experimental import pallas as pl
from jax.experimental.pallas import tpu as pltpu

_LANE = 128
_TARGET_BLOCK_BYTES = 2 << 20  # ~2 MiB blocks for the fallback copy path.


def _alias_noop_kernel(x_ref, o_ref):
    # The output HBM buffer *is* the input buffer (input_output_aliases), so
    # the bytes are already in place. touch() keeps a dependency on the
    # aliased output without moving any data: no HBM<->VMEM DMA, no vld/vst.
    del x_ref
    pltpu.touch(o_ref)


def _copy_kernel(x_ref, o_ref):
    # Straight VMEM tile pass-through (fallback path only).
    o_ref[...] = x_ref[...]


def _sublane_for(dtype) -> int:
    # Native packed sublane tile: 8 for 32-bit, 16 for 16-bit, 32 for 8-bit.
    return {4: 8, 2: 16, 1: 32}.get(jnp.dtype(dtype).itemsize, 8)


@functools.lru_cache(maxsize=None)
def _get_identity_fn(shape: tuple, dtype_name: str):
    """Build (once per shape/dtype) the jitted Pallas identity callable."""
    dtype = jnp.dtype(dtype_name)
    abstract_x = jax.ShapeDtypeStruct(shape, dtype)

    # -------- Preferred: aliased no-op, ~zero HBM traffic. --------
    def _noop(x):
        return pl.pallas_call(
            _alias_noop_kernel,
            out_shape=jax.ShapeDtypeStruct(shape, dtype),
            in_specs=[pl.BlockSpec(memory_space=pl.ANY)],
            out_specs=pl.BlockSpec(memory_space=pl.ANY),
            input_output_aliases={0: 0},
        )(x)

    noop_jit = jax.jit(_noop, donate_argnums=(0,))
    try:
        noop_jit.lower(abstract_x).compile()  # one-time AOT check
        return noop_jit
    except Exception:
        pass  # fall back to a real tiled copy below

    # -------- Fallback: lane-dense tiled copy (2N HBM bytes). --------
    itemsize = dtype.itemsize
    sub = _sublane_for(dtype)
    n = 1
    for d in shape:
        n *= int(d)
    pad_unit = sub * _LANE
    padded = pad_unit * (-(-n // pad_unit))
    rows = padded // _LANE
    target_rows = max(sub, (_TARGET_BLOCK_BYTES // (_LANE * itemsize)) // sub * sub)
    block_rows = min(rows, target_rows)
    grid = (pl.cdiv(rows, block_rows),)

    def _copy(x):
        flat = x.reshape(-1)
        if padded != n:
            flat = jnp.pad(flat, (0, padded - n))
        x2d = flat.reshape(rows, _LANE)
        out2d = pl.pallas_call(
            _copy_kernel,
            out_shape=jax.ShapeDtypeStruct((rows, _LANE), dtype),
            grid_spec=pltpu.PrefetchScalarGridSpec(
                num_scalar_prefetch=0,
                grid=grid,
                in_specs=[pl.BlockSpec((block_rows, _LANE), lambda i: (i, 0))],
                out_specs=pl.BlockSpec((block_rows, _LANE), lambda i: (i, 0)),
            ),
            input_output_aliases={0: 0},
            compiler_params=pltpu.CompilerParams(
                dimension_semantics=("parallel",)
            ),
        )(x2d)
        out = out2d.reshape(-1)
        if padded != n:
            out = out[:n]
        return out.reshape(shape)

    return jax.jit(_copy, donate_argnums=(0,))


def identity(x: jax.Array) -> jax.Array:
    """Identity forward pass (y = x) routed through a Pallas TPU kernel.

    NOTE: x is donated (the output aliases the input buffer); callers must not
    reuse x after this call.
    """
    # TODO(synk): a true nn.Identity would simply `return x`; the Pallas call
    # is kept so the op still routes through a TPU kernel as requested.
    if x.size == 0:
        return x
    fn = _get_identity_fn(tuple(x.shape), jnp.dtype(x.dtype).name)
    return fn(x)


if __name__ == "__main__":
    key = jax.random.PRNGKey(0)
    # Small NCHW input consistent with the module's forward.
    x = jax.random.normal(key, (2, 4, 16, 16), dtype=jnp.float32)

    # Snapshot x before the call: identity() donates its argument.
    x_expected = jax.device_get(x)

    y = identity(x)
    y = jax.block_until_ready(y)

    assert y.shape == x_expected.shape
    assert y.dtype == x_expected.dtype
    assert bool(jnp.array_equal(y, jnp.asarray(x_expected)))

    print("KERNEL_OK")
</pallas_src>

<mosaic_0001>
module attributes {stable_mosaic.version = 11 : i64} {
  func.func @_copy_kernel(%arg0: i32, %arg1: memref<16x128xf32, #tpu.memory_space<vmem>>, %arg2: memref<16x128xf32, #tpu.memory_space<vmem>>) attributes {dimension_semantics = [#tpu.dimension_semantics<parallel>], iteration_bounds = array<i64: 1>, scalar_prefetch = 0 : i64, scratch_operands = 0 : i64, tpu.core_type = #tpu.core_type<tc>, window_params = [{transform_indices = @transform_0, window_bounds = array<i64: 16, 128>}, {transform_indices = @transform_1, window_bounds = array<i64: 16, 128>}]} {
    %c0 = arith.constant 0 : index
    %c0_0 = arith.constant 0 : index
    %0 = vector.load %arg1[%c0, %c0_0] : memref<16x128xf32, #tpu.memory_space<vmem>>, vector<16x128xf32>
    %c0_1 = arith.constant 0 : index
    %c0_2 = arith.constant 0 : index
    %1 = vector.load %arg2[%c0_1, %c0_2] : memref<16x128xf32, #tpu.memory_space<vmem>>, vector<16x128xf32>
    tpu.vector_store %arg2[%c0_1, %c0_2], %0 {strides = array<i32>} : memref<16x128xf32, #tpu.memory_space<vmem>>, vector<16x128xf32>,
    return
  }
  func.func @transform_0(%arg0: i32) -> (i32, i32) {
    %c0_i32 = arith.constant 0 : i32
    %c0_i32_0 = arith.constant 0 : i32
    return %arg0, %c0_i32 : i32, i32
  }
  func.func @transform_1(%arg0: i32) -> (i32, i32) {
    %c0_i32 = arith.constant 0 : i32
    %c0_i32_0 = arith.constant 0 : i32
    return %arg0, %c0_i32 : i32, i32
  }
}

</mosaic_0001>

<llo_original>
// kernel: _copy.1
$region0: #{_copy.1}
  #allocation0 [shape = 'u32[]', space=smem, size = 0x4, offset = 0x4, fixed_abs, tag = 'smem constant byte address 0x4 - core index']
  #allocation1 [shape = 'u32[144,128]{1,0:T(1,128)}', space=vmem, size = 0x12000, scoped, tag = 'internal scratch']
  %s0 = inlined_call_operand.vmem [shape: f32[16,128], index: 0, kind: input, shape index: {}, may-alias: {0,1}]
  %s1 = inlined_call_operand.vmem [shape: f32[16,128], index: 1, kind: output, shape index: {}, may-alias: {0,1}]
  %s2 = sld [smem:[#allocation0]]
  $region14: #{_copy.1} parent=0
    _
  %s4 = ssub.s32 1, %s2
  %s5 = scalar_select 0, %s4, %s2
  // Predicated region
  $region2: #{_copy.1} parent=0 // pred_check
    _
  $region3: #{_copy.1} parent=0 // pred_check_branch
    %7 = sbr.rel (0) target = $region5
  $region4: #{_copy.1} parent=0 // pred_region
    _
  $region5: #{_copy.1} parent=0 // pred_fallthru
    _
  %v8 = vld [vmem:[%s0] sm:$0xff]
  %v9 = vld [vmem:[%s0 + $0x8] sm:$0xff]
  %10 = vst [vmem:[%s1] sm:$0xff] %v8
  %11 = vst [vmem:[%s1 + $0x8] sm:$0xff] %v9
  // Predicated region
  $region6: #{_copy.1} parent=0 // pred_check
    _
  $region7: #{_copy.1} parent=0 // pred_check_branch
    %13 = sbr.rel (0) target = $region9
  $region8: #{_copy.1} parent=0 // pred_region
    _
  $region9: #{_copy.1} parent=0 // pred_fallthru
    _
  // Predicated region
  $region10: #{_copy.1} parent=0 // pred_check
    _
  $region11: #{_copy.1} parent=0 // pred_check_branch
    %15 = sbr.rel (0) target = $region13
  $region12: #{_copy.1} parent=0 // pred_region
    _
  $region13: #{_copy.1} parent=0 // pred_fallthru
    _

</llo_original>
